<compile_context>
chip_gen: v7x
topology: tpu7x:2x2x1
jax: 0.10.0
libtpu: 0.0.40
codegen_flags: <defaults>
</compile_context>

<pallas_src>
import math

import jax
import jax.numpy as jnp
from jax.experimental import pallas as pl
from jax.experimental.pallas import tpu as pltpu


def _fourier_kernel(x_ref, w_ref, b_ref, out_ref):
    """out[r, :] = sin( sum_g x[r, g] * w[g, :] + b[0, :] ).

    x_ref:  (TB, G)  packed time values (G batch rows per output row).
    w_ref:  (G, Wd)  row g holds 2*pi*[W | W] in group g's lane window
                     [g*2H, (g+1)*2H) and zeros elsewhere, so the masked sum
                     reconstructs the lane-dense sin argument.
    b_ref:  (1, Wd)  phase bias: 0 on the sin half, pi/2 on the cos half
                     (sin(t + pi/2) == cos(t)), tiled per group.
    out_ref:(TB, Wd) Wd is a multiple of 128 -> one unmasked full-width store.
    """
    acc = b_ref[...] + x_ref[:, 0:1] * w_ref[0:1, :]
    for g in range(1, x_ref.shape[1]):          # static unroll; G is small
        acc = acc + x_ref[:, g:g + 1] * w_ref[g:g + 1, :]
    out_ref[...] = jnp.sin(acc).astype(out_ref.dtype)


def _round_up(n: int, m: int) -> int:
    return -(-n // m) * m


def _hw_budget():
    """(max output-block bytes, vmem_limit_bytes), generation-aware."""
    vmem_bytes = 64 << 20
    try:
        info = pltpu.get_tpu_info()
        vmem_bytes = int(getattr(info, "vmem_capacity_bytes", vmem_bytes))
    except Exception:
        pass
    if vmem_bytes >= (96 << 20):       # v5e / v6e: 128 MiB physical VMEM
        return 8 << 20, 64 << 20       # bigger blocks -> better HBM roofline
    return 4 << 20, 32 << 20           # v7x: 64 MiB -> favor >= 4 grid steps


def _pick_group(two_h: int) -> int:
    """Smallest G with (G * two_h) % 128 == 0 (minimizes masked-sum terms)."""
    if two_h % 128 == 0:
        return 1
    return 128 // math.gcd(two_h, 128)


def _pick_tb(rows: int, lane_width: int, max_block_bytes: int) -> int:
    """Rows per grid step: full array when tiny, else a multiple of 8 that
    gives >= 4 grid steps (megacore + pipelining) within the VMEM budget."""
    if rows <= 16:
        return rows                                      # single full block
    cap = max(8, (max_block_bytes // (lane_width * 4)) // 8 * 8)
    tb = _round_up(-(-rows // 4), 8)                     # ~4 grid steps
    return max(8, min(tb, cap))


def gaussian_fourier_projection(x: jax.Array, W: jax.Array,
                                *, out_dtype=jnp.float32) -> jax.Array:
    """Pallas equivalent of GaussianFourierProjection.forward.

    x: (batch,) time vector; W: (embed_dim // 2,) fixed Gaussian features.
    Returns (batch, embed_dim) = [sin(x*W*2pi) | cos(x*W*2pi)].
    Set out_dtype=jnp.bfloat16 to halve HBM writeback when the consumer
    accepts bf16 (default float32 for exact PyTorch parity).
    """
    x = jnp.asarray(x)
    # Mirror the PyTorch squeeze/unsqueeze normalization.
    if x.ndim > 1:
        x = jnp.squeeze(x)
    if x.ndim < 1:
        x = x[None]
    if x.ndim != 1:
        raise ValueError(
            "GaussianFourierProjection expects an effectively 1-D time "
            f"vector; got shape {x.shape} after squeeze.")

    B = int(x.shape[0])
    H = int(W.shape[0])
    two_h = 2 * H

    # Fold the fixed 2*pi scale into W once; concatenate [W | W] and use a
    # pi/2 phase bias on the cos half so the kernel does one fused sin.
    w2pi = W.astype(jnp.float32).reshape(H) * jnp.float32(2.0 * math.pi)
    w_cat = jnp.concatenate([w2pi, w2pi])                          # (2H,)
    b_cat = jnp.concatenate([jnp.zeros((H,), jnp.float32),
                             jnp.full((H,), 0.5 * math.pi, jnp.float32)])

    # Pack G batch rows per output row so the lane width G*2H is a multiple
    # of 128 (lane-dense sin + unmasked stores even for small embed_dim).
    G = _pick_group(two_h)
    lane_w = G * two_h
    max_block_bytes, vmem_limit = _hw_budget()

    # Pad the batch so it divides into G-groups and TB-row blocks; padded
    # rows (sin of zeros) are sliced off — far cheaper than lane-sparse I/O.
    rows = _round_up(B, G) // G
    TB = _pick_tb(rows, lane_w, max_block_bytes)
    rows_pad = _round_up(rows, TB)
    total = rows_pad * G

    x_pad = jnp.pad(x.astype(jnp.float32), (0, total - B)).reshape(rows_pad, G)

    # Per-group masked weight rows: row g = w_cat placed in its lane window.
    eye = jnp.eye(G, dtype=jnp.float32)
    w_rows = (eye[:, :, None] * w_cat[None, None, :]).reshape(G, lane_w)
    b_row = jnp.tile(b_cat, G).reshape(1, lane_w)

    out = pl.pallas_call(
        _fourier_kernel,
        out_shape=jax.ShapeDtypeStruct((rows_pad, lane_w), out_dtype),
        grid=(rows_pad // TB,),
        in_specs=[
            pl.BlockSpec((TB, G), lambda i: (i, 0)),
            pl.BlockSpec((G, lane_w), lambda i: (0, 0)),   # VMEM-resident
            pl.BlockSpec((1, lane_w), lambda i: (0, 0)),   # VMEM-resident
        ],
        out_specs=pl.BlockSpec((TB, lane_w), lambda i: (i, 0)),
        compiler_params=pltpu.CompilerParams(
            dimension_semantics=("parallel",),
            vmem_limit_bytes=vmem_limit),
    )(x_pad, w_rows, b_row)

    # Contiguous row-major reshape back to (B, embed_dim), dropping padding.
    return out.reshape(rows_pad * G, two_h)[:B]


def _reference(x: jax.Array, W: jax.Array) -> jax.Array:
    if x.ndim > 1:
        x = jnp.squeeze(x)
    if x.ndim < 1:
        x = x[None]
    x_proj = x[:, None] * W[None, :] * 2.0 * jnp.pi
    return jnp.concatenate([jnp.sin(x_proj), jnp.cos(x_proj)], axis=-1)


if __name__ == "__main__":
    embed_dim = 32
    batch = 8
    scale = 2.0 * math.pi

    key = jax.random.PRNGKey(0)
    k_w, k_x = jax.random.split(key)

    # Fixed "buffer" W (matches torch.randn(embed_dim // 2) * scale).
    W = jax.random.normal(k_w, (embed_dim // 2,), dtype=jnp.float32) * scale
    x = jax.random.uniform(k_x, (batch,), dtype=jnp.float32)

    out = jax.block_until_ready(gaussian_fourier_projection(x, W))
    ref = _reference(x, W)

    assert out.shape == (batch, embed_dim), out.shape
    # Tolerance documents two benign reassociations vs. PyTorch/XLA reference:
    # 2*pi folded into W, and cos(t) computed as sin(t + pi/2); both are
    # ulp-level on the sin/cos argument.
    assert jnp.allclose(out, ref, atol=2e-4, rtol=2e-4), "mismatch vs reference"

    print("KERNEL_OK")
</pallas_src>

<mosaic_0001>
module attributes {stable_mosaic.version = 11 : i64} {
  func.func @_fourier_kernel(%arg0: i32, %arg1: memref<2x4xf32, #tpu.memory_space<vmem>>, %arg2: memref<4x128xf32, #tpu.memory_space<vmem>>, %arg3: memref<1x128xf32, #tpu.memory_space<vmem>>, %arg4: memref<2x128xf32, #tpu.memory_space<vmem>>) attributes {dimension_semantics = [#tpu.dimension_semantics<parallel>], iteration_bounds = array<i64: 1>, scalar_prefetch = 0 : i64, scratch_operands = 0 : i64, tpu.core_type = #tpu.core_type<tc>, window_params = [{transform_indices = @transform_0, window_bounds = array<i64: 2, 4>}, {pipeline_mode = #tpu.pipeline_mode<synchronous>, transform_indices = @transform_1, window_bounds = array<i64: 4, 128>}, {pipeline_mode = #tpu.pipeline_mode<synchronous>, transform_indices = @transform_2, window_bounds = array<i64: 1, 128>}, {transform_indices = @transform_3, window_bounds = array<i64: 2, 128>}]} {
    %c0 = arith.constant 0 : index
    %c0_0 = arith.constant 0 : index
    %0 = vector.load %arg3[%c0, %c0_0] : memref<1x128xf32, #tpu.memory_space<vmem>>, vector<1x128xf32>
    %c0_1 = arith.constant 0 : index
    %c0_2 = arith.constant 0 : index
    %1 = vector.load %arg1[%c0_1, %c0_2] : memref<2x4xf32, #tpu.memory_space<vmem>>, vector<2x1xf32>
    %c0_3 = arith.constant 0 : index
    %c0_4 = arith.constant 0 : index
    %2 = vector.load %arg2[%c0_3, %c0_4] : memref<4x128xf32, #tpu.memory_space<vmem>>, vector<1x128xf32>
    %3 = vector.broadcast %1 : vector<2x1xf32> to vector<2x128xf32>
    %4 = vector.broadcast %2 : vector<1x128xf32> to vector<2x128xf32>
    %5 = arith.mulf %3, %4 : vector<2x128xf32>
    %6 = vector.broadcast %0 : vector<1x128xf32> to vector<2x128xf32>
    %7 = arith.addf %6, %5 : vector<2x128xf32>
    %c0_5 = arith.constant 0 : index
    %c1 = arith.constant 1 : index
    %8 = vector.load %arg1[%c0_5, %c1] : memref<2x4xf32, #tpu.memory_space<vmem>>, vector<2x1xf32>
    %c1_6 = arith.constant 1 : index
    %c0_7 = arith.constant 0 : index
    %9 = vector.load %arg2[%c1_6, %c0_7] : memref<4x128xf32, #tpu.memory_space<vmem>>, vector<1x128xf32>
    %10 = vector.broadcast %8 : vector<2x1xf32> to vector<2x128xf32>
    %11 = vector.broadcast %9 : vector<1x128xf32> to vector<2x128xf32>
    %12 = arith.mulf %10, %11 : vector<2x128xf32>
    %13 = arith.addf %7, %12 : vector<2x128xf32>
    %c0_8 = arith.constant 0 : index
    %c2 = arith.constant 2 : index
    %14 = vector.load %arg1[%c0_8, %c2] : memref<2x4xf32, #tpu.memory_space<vmem>>, vector<2x1xf32>
    %c2_9 = arith.constant 2 : index
    %c0_10 = arith.constant 0 : index
    %15 = vector.load %arg2[%c2_9, %c0_10] : memref<4x128xf32, #tpu.memory_space<vmem>>, vector<1x128xf32>
    %16 = vector.broadcast %14 : vector<2x1xf32> to vector<2x128xf32>
    %17 = vector.broadcast %15 : vector<1x128xf32> to vector<2x128xf32>
    %18 = arith.mulf %16, %17 : vector<2x128xf32>
    %19 = arith.addf %13, %18 : vector<2x128xf32>
    %c0_11 = arith.constant 0 : index
    %c3 = arith.constant 3 : index
    %20 = vector.load %arg1[%c0_11, %c3] : memref<2x4xf32, #tpu.memory_space<vmem>>, vector<2x1xf32>
    %c3_12 = arith.constant 3 : index
    %c0_13 = arith.constant 0 : index
    %21 = vector.load %arg2[%c3_12, %c0_13] : memref<4x128xf32, #tpu.memory_space<vmem>>, vector<1x128xf32>
    %22 = vector.broadcast %20 : vector<2x1xf32> to vector<2x128xf32>
    %23 = vector.broadcast %21 : vector<1x128xf32> to vector<2x128xf32>
    %24 = arith.mulf %22, %23 : vector<2x128xf32>
    %25 = arith.addf %19, %24 : vector<2x128xf32>
    %26 = math.sin %25 : vector<2x128xf32>
    %c0_14 = arith.constant 0 : index
    %c0_15 = arith.constant 0 : index
    %27 = vector.load %arg4[%c0_14, %c0_15] : memref<2x128xf32, #tpu.memory_space<vmem>>, vector<2x128xf32>
    tpu.vector_store %arg4[%c0_14, %c0_15], %26 {strides = array<i32>} : memref<2x128xf32, #tpu.memory_space<vmem>>, vector<2x128xf32>,
    return
  }
  func.func @transform_0(%arg0: i32) -> (i32, i32) {
    %c0_i32 = arith.constant 0 : i32
    %c0_i32_0 = arith.constant 0 : i32
    return %arg0, %c0_i32 : i32, i32
  }
  func.func @transform_1(%arg0: i32) -> (i32, i32) {
    %c0_i32 = arith.constant 0 : i32
    %c0_i32_0 = arith.constant 0 : i32
    %c0_i32_1 = arith.constant 0 : i32
    return %c0_i32, %c0_i32_0 : i32, i32
  }
  func.func @transform_2(%arg0: i32) -> (i32, i32) {
    %c0_i32 = arith.constant 0 : i32
    %c0_i32_0 = arith.constant 0 : i32
    %c0_i32_1 = arith.constant 0 : i32
    return %c0_i32, %c0_i32_0 : i32, i32
  }
  func.func @transform_3(%arg0: i32) -> (i32, i32) {
    %c0_i32 = arith.constant 0 : i32
    %c0_i32_0 = arith.constant 0 : i32
    return %arg0, %c0_i32 : i32, i32
  }
}

</mosaic_0001>

<llo_original>
// kernel: tpu_custom_call.1
$region0: #{tpu_custom_call.1}
  #allocation0 [shape = 'u32[]', space=smem, size = 0x4, offset = 0x4, fixed_abs, tag = 'smem constant byte address 0x4 - core index']
  #allocation1 [shape = 'u32[144,128]{1,0:T(1,128)}', space=vmem, size = 0x12000, scoped, tag = 'internal scratch']
  %s0 = inlined_call_operand.hbm [shape: f32[2,4], index: 0, kind: input, shape index: {}]
  %s1 = inlined_call_operand.hbm [shape: f32[4,128], index: 1, kind: input, shape index: {}]
  %s2 = inlined_call_operand.vmem [shape: f32[1,128], index: 2, kind: input, shape index: {}]
  %s3 = inlined_call_operand.hbm [shape: f32[2,128], index: 3, kind: output, shape index: {}]
  %s4 = sld [smem:[#allocation0]]
  $region30: #{tpu_custom_call.1} parent=0
    _
  %s6 = ssub.s32 1, %s4
  %s7 = scalar_select 0, %s6, %s4
  $region1: #{tpu_custom_call.1} parent=0
    #allocation2 [shape = 'u8[1024]{0}', space=vmem, size = 0x400, scoped, tag = 'input window, operand 0, single buffered']
    #allocation3 [shape = 's32[1]{0}', space=sflag, size = 0x4, scoped, tag = 'scoped memory for tpu_custom_call.1']
    #allocation4 [shape = 's32[1]{0}', space=sflag, size = 0x4, scoped, tag = 'scoped memory for tpu_custom_call.1']
    #allocation5 [shape = 'u8[2048]{0}', space=vmem, size = 0x800, scoped, tag = 'input window, operand 1, single buffered']
    #allocation6 [shape = 's32[1]{0}', space=sflag, size = 0x4, scoped, tag = 'scoped memory for tpu_custom_call.1']
    #allocation7 [shape = 'u8[1024]{0}', space=vmem, size = 0x400, scoped, tag = 'output window, operand 0, single buffered']
    %8 = vsyncpa [#allocation3], 0
    %9 = vsyncpa [#allocation6], 0
    %10 = vsyncpa [#allocation4], 0
    // Predicated region
    $region2: #{tpu_custom_call.1} parent=1 // pred_check
      _
    $region3: #{tpu_custom_call.1} parent=1 // pred_check_branch
      %12 = sbr.rel (0) target = $region5
    $region4: #{tpu_custom_call.1} parent=1 // pred_region
      %s14 = ssub.s32 32, 32
      %15 = vsyncadd [#allocation3], %s14
      %s17 = sshll.u32 [#allocation2], 4
      %s18 = int_to_ptr.vmem [resolvable:$true] %s17
      %20 = dma.hbm_to_vmem [thread:$0]  %s0, 32, %s18, [#allocation3]
    $region5: #{tpu_custom_call.1} parent=1 // pred_fallthru
      _
    // Predicated region
    $region6: #{tpu_custom_call.1} parent=1 // pred_check
      _
    $region7: #{tpu_custom_call.1} parent=1 // pred_check_branch
      %22 = sbr.rel (0) target = $region9
    $region8: #{tpu_custom_call.1} parent=1 // pred_region
      %s24 = ssub.s32 64, 64
      %25 = vsyncadd [#allocation6], %s24
      %s27 = sshll.u32 [#allocation5], 4
      %s28 = int_to_ptr.vmem [resolvable:$true] %s27
      %30 = dma.hbm_to_vmem [thread:$0]  %s1, 64, %s28, [#allocation6]
    $region9: #{tpu_custom_call.1} parent=1 // pred_fallthru
      _
    // Predicated region
    $region10: #{tpu_custom_call.1} parent=1 // pred_check
      _
    $region11: #{tpu_custom_call.1} parent=1 // pred_check_branch
      %32 = sbr.rel (0) target = $region13
    $region12: #{tpu_custom_call.1} parent=1 // pred_region
      _
    $region13: #{tpu_custom_call.1} parent=1 // pred_fallthru
      _
    // Predicated region
    $region14: #{tpu_custom_call.1} parent=1 // pred_check
      _
    $region15: #{tpu_custom_call.1} parent=1 // pred_check_branch
      %34 = sbr.rel (0) target = $region17
    $region16: #{tpu_custom_call.1} parent=1 // pred_region
      %35 = dma.done [#allocation3], 32
    $region17: #{tpu_custom_call.1} parent=1 // pred_fallthru
      _
    // Predicated region
    $region18: #{tpu_custom_call.1} parent=1 // pred_check
      _
    $region19: #{tpu_custom_call.1} parent=1 // pred_check_branch
      %37 = sbr.rel (0) target = $region21
    $region20: #{tpu_custom_call.1} parent=1 // pred_region
      %38 = dma.done [#allocation6], 64
    $region21: #{tpu_custom_call.1} parent=1 // pred_fallthru
      _
    %v39 = vld [vmem:[%s2] sm:$0x1]
    %v40 = vld [vmem:[#allocation2] sm:$0x3]
    %v41 = vld [vmem:[#allocation5] sm:$0x1]
    %43 = vset.pattern.permute.xlu0 0
    %44 = vperm.xlu0 %43, %v40
    %v45 = vpop.permute.xlu0 %44
    %v47 = vlaneseq
    %v48 = vshrl.u32 %v47, 7
    %v49 = vsub.s32 0, %v48
    %v50 = vrot.slane %v41, %v49
    %v51 = vmul.f32 %v45, %v50
    %v53 = vlaneseq
    %v54 = vshrl.u32 %v53, 7
    %v55 = vsub.s32 0, %v54
    %v56 = vrot.slane %v39, %v55
    %v58 = vadd.f32 %v56, %v51
    %v59 = vld [vmem:[#allocation5 + $0x1] sm:$0x1]
    %60 = vset.pattern.permute.xlu0 1
    %61 = vperm.xlu0 %60, %v40
    %v62 = vpop.permute.xlu0 %61
    %v64 = vlaneseq
    %v65 = vshrl.u32 %v64, 7
    %v66 = vsub.s32 0, %v65
    %v67 = vrot.slane %v59, %v66
    %v68 = vmul.f32 %v62, %v67
    %v69 = vadd.f32 %v58, %v68
    %v70 = vld [vmem:[#allocation5 + $0x2] sm:$0x1]
    %71 = vset.pattern.permute.xlu0 2
    %72 = vperm.xlu0 %71, %v40
    %v73 = vpop.permute.xlu0 %72
    %v75 = vlaneseq
    %v76 = vshrl.u32 %v75, 7
    %v77 = vsub.s32 0, %v76
    %v78 = vrot.slane %v70, %v77
    %v79 = vmul.f32 %v73, %v78
    %v80 = vadd.f32 %v69, %v79
    %v81 = vld [vmem:[#allocation5 + $0x3] sm:$0x1]
    %82 = vset.pattern.permute.xlu0 3
    %83 = vperm.xlu0 %82, %v40
    %v84 = vpop.permute.xlu0 %83
    %v86 = vlaneseq
    %v87 = vshrl.u32 %v86, 7
    %v88 = vsub.s32 0, %v87
    %v89 = vrot.slane %v81, %v88
    %v90 = vmul.f32 %v84, %v89
    %v91 = vadd.f32 %v80, %v90
    %v92 = vand.u32 2147483647, %v91
    %vm93 = vcmp.le.f32.partialorder %v92, 0.7853982
    %vm94 = vcmp.lt.s32.totalorder %v91, 0
    %v95 = vand.u32 %v91, 2139095040
    %v96 = vshrl.u32 %v95, 23
    %v97 = vsub.s32 %v96, 127
    %v98 = vand.u32 2147483647, %v91
    %v99 = vand.u32 %v98, 8388607
    %v100 = vor.u32 %v99, 8388608
    %v101 = vsub.s32 0, %v100
    %v102 = vadd.s32 %v97, 1
    %vm103 = vcmp.gt.s32.totalorder %v102, 0
    %v104 = vsel %vm103, %v102, 0
    %v105 = vshrl.u32 %v104, 5
    %v106 = vand.u32 %v104, 31
    %v107 = vsub.s32 32, %v106
    %v108 = vshrl.u32 683565275, %v107
    %v109 = vshll.u32 683565275, %v106
    %v110 = vshrl.u32 2475754826, %v107
    %v111 = vor.u32 %v109, %v110
    %v112 = vshll.u32 2475754826, %v106
    %v113 = vshrl.u32 2131351028, %v107
    %v114 = vor.u32 %v112, %v113
    %v115 = vshll.u32 2131351028, %v106
    %v116 = vshrl.u32 2102212464, %v107
    %v117 = vor.u32 %v115, %v116
    %v118 = vshll.u32 2102212464, %v106
    %v119 = vshrl.u32 920167782, %v107
    %v120 = vor.u32 %v118, %v119
    %v121 = vshll.u32 920167782, %v106
    %v122 = vshrl.u32 1326507024, %v107
    %v123 = vor.u32 %v121, %v122
    %vm124 = vcmp.lt.s32.totalorder %v105, 1
    %vm125 = vcmp.lt.s32.totalorder %v105, 2
    %vm126 = vcmp.lt.s32.totalorder %v105, 3
    %vm127 = vcmp.lt.s32.totalorder %v105, 4
    %v128 = vsel %vm124, %v108, %v111
    %v129 = vsel %vm127, %v117, 2102212464
    %v130 = vsel %vm126, %v114, %v129
    %v131 = vsel %vm125, %v128, %v130
    %v132 = vsel %vm124, %v111, %v114
    %v133 = vsel %vm127, %v120, 920167782
    %v134 = vsel %vm126, %v117, %v133
    %v135 = vsel %vm125, %v132, %v134
    %v136 = vsel %vm124, %v114, %v117
    %v137 = vsel %vm127, %v123, 1326507024
    %v138 = vsel %vm126, %v120, %v137
    %v139 = vsel %vm125, %v136, %v138
    %v140 = vshll.u32 %v100, 8
    %v141 = vmul.u32.u64.compose %v140, %v139
    %v142 = vextract.low.u32 %v141
    %v143 = vextract.high.u32 %v141
    %v144 = vmul.u32.u64.compose %v140, %v135
    %v145 = vextract.low.u32 %v144
    %v146 = vextract.high.u32 %v144
    %v147 = vmul.u32 %v140, %v131
    %v148 = vadd.s32 %v143, %v145
    %vm149 = vc.u32 %v143, %v145
    %v150 = vadd.s32 %v146, 1
    %v151 = vsel %vm149, %v150, %v146
    %v152 = vadd.s32 %v147, %v151
    %v153 = vadd.s32 %v152, 536870912
    %v154 = vshrl.u32 %v153, 30
    %v155 = vshll.u32 %v154, 30
    %v156 = vsub.s32 %v152, %v155
    %vm157 = vcmp.lt.s32.totalorder %v156, 0
    %v158 = vsub.s32 0, %v156
    %v159 = vsel %vm157, %v158, %v156
    %v160 = vclz %v159
    %v161 = vsub.s32 %v160, 2
    %vm162 = vcmp.gt.s32.totalorder 0, %v161
    %v163 = vsel %vm162, 0, %v161
    %v164 = vsub.s32 32, %v163
    %v165 = vshll.u32 %v156, %v163
    %v166 = vshrl.u32 %v148, %v164
    %v167 = vor.u32 %v165, %v166
    %v168 = vsub.s32 4294967266, %v163
    %v169 = vadd.s32 %v168, 127
    %v170 = vshll.u32 %v169, 23
    %v171 = vor.u32 4788187, %v170
    %v172 = vand.u32 2147483647, %v171
    %v174 = vcvt.s32.f32 %v167
    %v175 = vmul.f32 %v174, %v172
    %v176 = vxor.u32 %v175, 2147483648
    %v177 = vsel %vm94, %v176, %v175
    %v178 = vsub.s32 4, %v154
    %v179 = vsel %vm94, %v178, %v154
    %v180 = vsel %vm93, %v91, %v177
    %v181 = vsel %vm93, 0, %v179
    %v182 = vcosq.f32.pop %v180
    %v183 = vsinq.f32.pop %v180
    %vm184 = vweird.f32 %v91
    %v185 = vadd.s32 %v181, 3
    %v186 = vand.u32 %v185, 3
    %vm187 = vcmp.lt.s32.totalorder %v186, 2
    %vm188 = vcmp.eq.s32.totalorder %v186, 0
    %v189 = vxor.u32 %v183, 2147483648
    %v190 = vsel %vm188, %v182, %v189
    %vm191 = vcmp.eq.s32.totalorder %v186, 2
    %v192 = vxor.u32 %v182, 2147483648
    %v193 = vsel %vm191, %v192, %v183
    %v194 = vsel %vm187, %v190, %v193
    %v195 = vsel %vm184, nan, %v194
    %196 = vst [vmem:[#allocation7] sm:$0x3] %v195
    // Predicated region
    $region22: #{tpu_custom_call.1} parent=1 // pred_check
      _
    $region23: #{tpu_custom_call.1} parent=1 // pred_check_branch
      %198 = sbr.rel (0) target = $region25
    $region24: #{tpu_custom_call.1} parent=1 // pred_region
      %s200 = ssub.s32 32, 32
      %201 = vsyncadd [#allocation4], %s200
      %s203 = sshll.u32 [#allocation7], 4
      %s204 = int_to_ptr.vmem [resolvable:$true] %s203
      %206 = dma.vmem_to_hbm [thread:$0]  %s204, 32, %s3, [#allocation4]
    $region25: #{tpu_custom_call.1} parent=1 // pred_fallthru
      _
    // Predicated region
    $region26: #{tpu_custom_call.1} parent=1 // pred_check
      _
    $region27: #{tpu_custom_call.1} parent=1 // pred_check_branch
      %208 = sbr.rel (0) target = $region29
    $region28: #{tpu_custom_call.1} parent=1 // pred_region
      %209 = dma.done [#allocation4], 32
    $region29: #{tpu_custom_call.1} parent=1 // pred_fallthru
      _
    %210 = vsyncpa [#allocation3], 1
    %211 = vsyncpa [#allocation6], 1
    %212 = vsyncpa [#allocation4], 1

</llo_original>
